<compile_context>
chip_gen: v6e
topology: v6e:2x2x1
jax: 0.10.0
libtpu: 0.0.40
codegen_flags: <defaults>
</compile_context>

<pallas_src>
import functools

import jax
import jax.numpy as jnp
from jax.experimental import pallas as pl
from jax.experimental.pallas import tpu as pltpu

FEATURE_DIM = 90
LATENT_DIM = 10
H1, H2 = 64, 32

PAD = 128            # lane-dense padded width for every hidden/output layer
ALIGN = 16           # sublane alignment (bf16-friendly)
NUM_LAYERS = 6
_LAYER_DIMS = [
    (FEATURE_DIM, H1), (H1, H2), (H2, LATENT_DIM),   # encoder
    (LATENT_DIM, H2), (H2, H1), (H1, FEATURE_DIM),   # decoder
]


def _round_up(n, m):
    return ((n + m - 1) // m) * m


def _layer(h, w, b, relu):
    # MXU matmul with f32 accumulation; bf16 epilogue (bias add + ReLU).
    y = jnp.dot(h, w, preferred_element_type=jnp.float32).astype(jnp.bfloat16) + b
    if relu:
        y = jnp.maximum(y, 0.0)
    return y


def _autoencoder_kernel(x_ref, w1_ref, w_ref, b_ref, o_ref):
    # x_ref : (TB, 90)       f32   raw input tile (cast + pad fused in-kernel)
    # w1_ref: (90, 128)      bf16  first-layer weight (K=90 contraction)
    # w_ref : (128, 5*128)   bf16  layers 2..6 weight slab (VMEM resident)
    # b_ref : (1, 6*128)     bf16  bias slab (VMEM resident)
    # o_ref : (TB, 128)      bf16  padded reconstruction
    x = x_ref[...].astype(jnp.bfloat16)
    # Layer 1: contract over the raw 90 features; output is already 128-lane
    # padded (padded weight columns/bias lanes are exactly zero).
    h = _layer(x, w1_ref[...], b_ref[:, 0:PAD], relu=True)
    for i in range(1, NUM_LAYERS):
        w = w_ref[:, PAD * (i - 1):PAD * i]          # (128, 128), static slice
        b = b_ref[:, PAD * i:PAD * (i + 1)]          # (1, 128)
        h = _layer(h, w, b, relu=(i != 2))           # no ReLU on latent proj
    o_ref[...] = h.astype(o_ref.dtype)


def pack_params(params):
    """Pack parameters once (hoisted out of the per-call path).

    Returns:
      w1     : (90, 128)     bf16, zero-padded columns
      w_slab : (128, 5*128)  bf16, layers 2..6, zero-padded
      b_slab : (1, 6*128)    bf16, zero-padded
    Padded rows/cols are exactly zero so padded lanes stay zero end-to-end.
    """
    w1 = jnp.zeros((FEATURE_DIM, PAD), jnp.bfloat16)
    w1 = w1.at[:, :H1].set(params["w1"].astype(jnp.bfloat16))
    w_slab = jnp.zeros((PAD, (NUM_LAYERS - 1) * PAD), jnp.bfloat16)
    b_slab = jnp.zeros((1, NUM_LAYERS * PAD), jnp.bfloat16)
    b_slab = b_slab.at[0, :H1].set(params["b1"][0].astype(jnp.bfloat16))
    for i in range(1, NUM_LAYERS):
        fan_in, fan_out = _LAYER_DIMS[i]
        w = params[f"w{i + 1}"].astype(jnp.bfloat16)
        b = params[f"b{i + 1}"].astype(jnp.bfloat16)
        w_slab = w_slab.at[:fan_in, PAD * (i - 1):PAD * (i - 1) + fan_out].set(w)
        b_slab = b_slab.at[0, PAD * i:PAD * i + fan_out].set(b[0])
    return w1, w_slab, b_slab


@functools.partial(jax.jit, static_argnames=("tb",))
def _forward_impl(x, w1, w_slab, b_slab, tb):
    B, F = x.shape
    assert F == FEATURE_DIM

    # Batch tile: multiple of 16 sublanes, default 2048 (amortizes per-step
    # overhead).  If the whole batch would be a single tile, split it in two so
    # v7x's two TensorCores both get work via dimension_semantics=("parallel",).
    tb = max(ALIGN, (tb // ALIGN) * ALIGN)
    Bt = _round_up(B, ALIGN)
    TB = min(tb, Bt)
    if Bt // TB <= 1 and Bt >= 2 * ALIGN:
        TB = _round_up(Bt // 2, ALIGN)
    Bp = _round_up(B, TB)

    # Only a cheap batch-row pad on the raw f32 input (fuses under jit); the
    # bf16 cast + 128-lane padding happen inside the kernel.
    x_pad = jnp.pad(x, ((0, Bp - B), (0, 0)))

    # Weight/bias slabs use constant index_maps, so they are DMA'd once and
    # stay VMEM-resident.  (Total VMEM at TB=2048 is ~3 MiB, far below limits,
    # so single-buffering them via pl.Buffered(1) buys nothing here.)
    out = pl.pallas_call(
        _autoencoder_kernel,
        out_shape=jax.ShapeDtypeStruct((Bp, PAD), jnp.bfloat16),
        grid=(Bp // TB,),
        in_specs=[
            pl.BlockSpec((TB, FEATURE_DIM), lambda i: (i, 0)),             # x tile
            pl.BlockSpec((FEATURE_DIM, PAD), lambda i: (0, 0)),            # w1
            pl.BlockSpec((PAD, (NUM_LAYERS - 1) * PAD), lambda i: (0, 0)),  # w slab
            pl.BlockSpec((1, NUM_LAYERS * PAD), lambda i: (0, 0)),          # b slab
        ],
        out_specs=pl.BlockSpec((TB, PAD), lambda i: (i, 0)),
        compiler_params=pltpu.CompilerParams(
            dimension_semantics=("parallel",),   # v7x: shard batch tiles across 2 TCs
        ),
    )(x_pad, w1, w_slab, b_slab)

    # Slice first (bf16, so the slice pass is cheap), then restore f32 output.
    return out[:B, :FEATURE_DIM].astype(jnp.float32)


def stock_autoencoder_forward(x, packed_params, *, tb=2048):
    """x: (B, 90) float32 -> (B, 90) float32 reconstruction."""
    w1, w_slab, b_slab = packed_params
    return _forward_impl(x, w1, w_slab, b_slab, tb)


def init_params(key):
    """PyTorch nn.Linear default init (uniform +-1/sqrt(fan_in)).
    Weights stored as (in, out) so forward computes x @ W + b."""
    params = {}
    for i, (fan_in, fan_out) in enumerate(_LAYER_DIMS, start=1):
        key, kw, kb = jax.random.split(key, 3)
        bound = 1.0 / jnp.sqrt(fan_in)
        params[f"w{i}"] = jax.random.uniform(
            kw, (fan_in, fan_out), jnp.float32, -bound, bound)
        params[f"b{i}"] = jax.random.uniform(
            kb, (1, fan_out), jnp.float32, -bound, bound)
    return params


def reference_forward(x, params):
    """Pure-JAX reference emulating the kernel's numerics
    (bf16 matmul operands, f32 accumulation, bf16 bias-add/ReLU epilogue)."""
    def lin(h, w, b, relu):
        y = jnp.dot(h.astype(jnp.bfloat16), w.astype(jnp.bfloat16),
                    preferred_element_type=jnp.float32)
        y = y.astype(jnp.bfloat16) + b.astype(jnp.bfloat16)
        return jnp.maximum(y, 0.0) if relu else y

    h = lin(x, params["w1"], params["b1"], True)
    h = lin(h, params["w2"], params["b2"], True)
    z = lin(h, params["w3"], params["b3"], False)
    h = lin(z, params["w4"], params["b4"], True)
    h = lin(h, params["w5"], params["b5"], True)
    y = lin(h, params["w6"], params["b6"], True)   # final ReLU per original module
    return y.astype(jnp.float32)


if __name__ == "__main__":
    key = jax.random.PRNGKey(0)
    key, kx = jax.random.split(key)
    params = init_params(key)
    packed = pack_params(params)   # packed once, reused across calls

    # Small demo batch (single tile, default tb).
    x = jax.random.normal(kx, (8, FEATURE_DIM), jnp.float32)
    out = jax.block_until_ready(stock_autoencoder_forward(x, packed))
    ref = reference_forward(x, params)
    assert out.shape == (8, FEATURE_DIM)
    assert jnp.allclose(out, ref, atol=2e-2, rtol=2e-2), "mismatch vs JAX reference"

    # Ragged batch with a multi-step grid (exercises tiling + padding + both-TC path).
    key, kx2 = jax.random.split(key)
    x2 = jax.random.normal(kx2, (20, FEATURE_DIM), jnp.float32)
    out2 = jax.block_until_ready(stock_autoencoder_forward(x2, packed, tb=16))
    ref2 = reference_forward(x2, params)
    assert out2.shape == (20, FEATURE_DIM)
    assert jnp.allclose(out2, ref2, atol=2e-2, rtol=2e-2), "mismatch on ragged batch"

    print("KERNEL_OK")
</pallas_src>

<mosaic_0001>
module attributes {stable_mosaic.version = 11 : i64} {
  func.func @_autoencoder_kernel(%arg0: i32, %arg1: memref<16x90xf32, #tpu.memory_space<vmem>>, %arg2: memref<90x128xbf16, #tpu.memory_space<vmem>>, %arg3: memref<128x640xbf16, #tpu.memory_space<vmem>>, %arg4: memref<1x768xbf16, #tpu.memory_space<vmem>>, %arg5: memref<16x128xbf16, #tpu.memory_space<vmem>>) attributes {dimension_semantics = [#tpu.dimension_semantics<parallel>], iteration_bounds = array<i64: 1>, scalar_prefetch = 0 : i64, scratch_operands = 0 : i64, tpu.core_type = #tpu.core_type<tc>, window_params = [{transform_indices = @transform_0, window_bounds = array<i64: 16, 90>}, {pipeline_mode = #tpu.pipeline_mode<synchronous>, transform_indices = @transform_1, window_bounds = array<i64: 90, 128>}, {pipeline_mode = #tpu.pipeline_mode<synchronous>, transform_indices = @transform_2, window_bounds = array<i64: 128, 640>}, {pipeline_mode = #tpu.pipeline_mode<synchronous>, transform_indices = @transform_3, window_bounds = array<i64: 1, 768>}, {transform_indices = @transform_4, window_bounds = array<i64: 16, 128>}]} {
    %c0 = arith.constant 0 : index
    %c0_0 = arith.constant 0 : index
    %0 = vector.load %arg1[%c0, %c0_0] : memref<16x90xf32, #tpu.memory_space<vmem>>, vector<16x90xf32>
    %1 = arith.truncf %0 : vector<16x90xf32> to vector<16x90xbf16>
    %c0_1 = arith.constant 0 : index
    %c0_2 = arith.constant 0 : index
    %2 = vector.load %arg2[%c0_1, %c0_2] : memref<90x128xbf16, #tpu.memory_space<vmem>>, vector<90x128xbf16>
    %c0_3 = arith.constant 0 : index
    %c0_4 = arith.constant 0 : index
    %3 = vector.load %arg4[%c0_3, %c0_4] : memref<1x768xbf16, #tpu.memory_space<vmem>>, vector<1x128xbf16>
    %cst = arith.constant dense<0.000000e+00> : vector<16x128xf32>
    %4 = tpu.matmul %1, %2, %cst {dimension_numbers = #tpu.dot_dimension_numbers<[1], [0], [0], [1], [0, 0, 1, 1], [], []>} : vector<16x90xbf16>, vector<90x128xbf16>, vector<16x128xf32> -> vector<16x128xf32>
    %5 = arith.truncf %4 : vector<16x128xf32> to vector<16x128xbf16>
    %6 = vector.broadcast %3 : vector<1x128xbf16> to vector<16x128xbf16>
    %7 = arith.addf %5, %6 : vector<16x128xbf16>
    %cst_5 = arith.constant 0.000000e+00 : bf16
    %8 = vector.broadcast %cst_5 : bf16 to vector<16x128xbf16>
    %9 = arith.maximumf %7, %8 : vector<16x128xbf16>
    %c0_6 = arith.constant 0 : index
    %c0_7 = arith.constant 0 : index
    %10 = vector.load %arg3[%c0_6, %c0_7] : memref<128x640xbf16, #tpu.memory_space<vmem>>, vector<128x128xbf16>
    %c0_8 = arith.constant 0 : index
    %c128 = arith.constant 128 : index
    %11 = vector.load %arg4[%c0_8, %c128] : memref<1x768xbf16, #tpu.memory_space<vmem>>, vector<1x128xbf16>
    %cst_9 = arith.constant dense<0.000000e+00> : vector<16x128xf32>
    %12 = tpu.matmul %9, %10, %cst_9 {dimension_numbers = #tpu.dot_dimension_numbers<[1], [0], [0], [1], [0, 0, 1, 1], [], []>} : vector<16x128xbf16>, vector<128x128xbf16>, vector<16x128xf32> -> vector<16x128xf32>
    %13 = arith.truncf %12 : vector<16x128xf32> to vector<16x128xbf16>
    %14 = vector.broadcast %11 : vector<1x128xbf16> to vector<16x128xbf16>
    %15 = arith.addf %13, %14 : vector<16x128xbf16>
    %cst_10 = arith.constant 0.000000e+00 : bf16
    %16 = vector.broadcast %cst_10 : bf16 to vector<16x128xbf16>
    %17 = arith.maximumf %15, %16 : vector<16x128xbf16>
    %c0_11 = arith.constant 0 : index
    %c128_12 = arith.constant 128 : index
    %18 = vector.load %arg3[%c0_11, %c128_12] : memref<128x640xbf16, #tpu.memory_space<vmem>>, vector<128x128xbf16>
    %c0_13 = arith.constant 0 : index
    %c256 = arith.constant 256 : index
    %19 = vector.load %arg4[%c0_13, %c256] : memref<1x768xbf16, #tpu.memory_space<vmem>>, vector<1x128xbf16>
    %cst_14 = arith.constant dense<0.000000e+00> : vector<16x128xf32>
    %20 = tpu.matmul %17, %18, %cst_14 {dimension_numbers = #tpu.dot_dimension_numbers<[1], [0], [0], [1], [0, 0, 1, 1], [], []>} : vector<16x128xbf16>, vector<128x128xbf16>, vector<16x128xf32> -> vector<16x128xf32>
    %21 = arith.truncf %20 : vector<16x128xf32> to vector<16x128xbf16>
    %22 = vector.broadcast %19 : vector<1x128xbf16> to vector<16x128xbf16>
    %23 = arith.addf %21, %22 : vector<16x128xbf16>
    %c0_15 = arith.constant 0 : index
    %c256_16 = arith.constant 256 : index
    %24 = vector.load %arg3[%c0_15, %c256_16] : memref<128x640xbf16, #tpu.memory_space<vmem>>, vector<128x128xbf16>
    %c0_17 = arith.constant 0 : index
    %c384 = arith.constant 384 : index
    %25 = vector.load %arg4[%c0_17, %c384] : memref<1x768xbf16, #tpu.memory_space<vmem>>, vector<1x128xbf16>
    %cst_18 = arith.constant dense<0.000000e+00> : vector<16x128xf32>
    %26 = tpu.matmul %23, %24, %cst_18 {dimension_numbers = #tpu.dot_dimension_numbers<[1], [0], [0], [1], [0, 0, 1, 1], [], []>} : vector<16x128xbf16>, vector<128x128xbf16>, vector<16x128xf32> -> vector<16x128xf32>
    %27 = arith.truncf %26 : vector<16x128xf32> to vector<16x128xbf16>
    %28 = vector.broadcast %25 : vector<1x128xbf16> to vector<16x128xbf16>
    %29 = arith.addf %27, %28 : vector<16x128xbf16>
    %cst_19 = arith.constant 0.000000e+00 : bf16
    %30 = vector.broadcast %cst_19 : bf16 to vector<16x128xbf16>
    %31 = arith.maximumf %29, %30 : vector<16x128xbf16>
    %c0_20 = arith.constant 0 : index
    %c384_21 = arith.constant 384 : index
    %32 = vector.load %arg3[%c0_20, %c384_21] : memref<128x640xbf16, #tpu.memory_space<vmem>>, vector<128x128xbf16>
    %c0_22 = arith.constant 0 : index
    %c512 = arith.constant 512 : index
    %33 = vector.load %arg4[%c0_22, %c512] : memref<1x768xbf16, #tpu.memory_space<vmem>>, vector<1x128xbf16>
    %cst_23 = arith.constant dense<0.000000e+00> : vector<16x128xf32>
    %34 = tpu.matmul %31, %32, %cst_23 {dimension_numbers = #tpu.dot_dimension_numbers<[1], [0], [0], [1], [0, 0, 1, 1], [], []>} : vector<16x128xbf16>, vector<128x128xbf16>, vector<16x128xf32> -> vector<16x128xf32>
    %35 = arith.truncf %34 : vector<16x128xf32> to vector<16x128xbf16>
    %36 = vector.broadcast %33 : vector<1x128xbf16> to vector<16x128xbf16>
    %37 = arith.addf %35, %36 : vector<16x128xbf16>
    %cst_24 = arith.constant 0.000000e+00 : bf16
    %38 = vector.broadcast %cst_24 : bf16 to vector<16x128xbf16>
    %39 = arith.maximumf %37, %38 : vector<16x128xbf16>
    %c0_25 = arith.constant 0 : index
    %c512_26 = arith.constant 512 : index
    %40 = vector.load %arg3[%c0_25, %c512_26] : memref<128x640xbf16, #tpu.memory_space<vmem>>, vector<128x128xbf16>
    %c0_27 = arith.constant 0 : index
    %c640 = arith.constant 640 : index
    %41 = vector.load %arg4[%c0_27, %c640] : memref<1x768xbf16, #tpu.memory_space<vmem>>, vector<1x128xbf16>
    %cst_28 = arith.constant dense<0.000000e+00> : vector<16x128xf32>
    %42 = tpu.matmul %39, %40, %cst_28 {dimension_numbers = #tpu.dot_dimension_numbers<[1], [0], [0], [1], [0, 0, 1, 1], [], []>} : vector<16x128xbf16>, vector<128x128xbf16>, vector<16x128xf32> -> vector<16x128xf32>
    %43 = arith.truncf %42 : vector<16x128xf32> to vector<16x128xbf16>
    %44 = vector.broadcast %41 : vector<1x128xbf16> to vector<16x128xbf16>
    %45 = arith.addf %43, %44 : vector<16x128xbf16>
    %cst_29 = arith.constant 0.000000e+00 : bf16
    %46 = vector.broadcast %cst_29 : bf16 to vector<16x128xbf16>
    %47 = arith.maximumf %45, %46 : vector<16x128xbf16>
    %c0_30 = arith.constant 0 : index
    %c0_31 = arith.constant 0 : index
    %48 = vector.load %arg5[%c0_30, %c0_31] : memref<16x128xbf16, #tpu.memory_space<vmem>>, vector<16x128xbf16>
    tpu.vector_store %arg5[%c0_30, %c0_31], %47 {strides = array<i32>} : memref<16x128xbf16, #tpu.memory_space<vmem>>, vector<16x128xbf16>,
    return
  }
  func.func @transform_0(%arg0: i32) -> (i32, i32) {
    %c0_i32 = arith.constant 0 : i32
    %c0_i32_0 = arith.constant 0 : i32
    return %arg0, %c0_i32 : i32, i32
  }
  func.func @transform_1(%arg0: i32) -> (i32, i32) {
    %c0_i32 = arith.constant 0 : i32
    %c0_i32_0 = arith.constant 0 : i32
    %c0_i32_1 = arith.constant 0 : i32
    return %c0_i32, %c0_i32_0 : i32, i32
  }
  func.func @transform_2(%arg0: i32) -> (i32, i32) {
    %c0_i32 = arith.constant 0 : i32
    %c0_i32_0 = arith.constant 0 : i32
    %c0_i32_1 = arith.constant 0 : i32
    return %c0_i32, %c0_i32_0 : i32, i32
  }
  func.func @transform_3(%arg0: i32) -> (i32, i32) {
    %c0_i32 = arith.constant 0 : i32
    %c0_i32_0 = arith.constant 0 : i32
    %c0_i32_1 = arith.constant 0 : i32
    return %c0_i32, %c0_i32_0 : i32, i32
  }
  func.func @transform_4(%arg0: i32) -> (i32, i32) {
    %c0_i32 = arith.constant 0 : i32
    %c0_i32_0 = arith.constant 0 : i32
    return %arg0, %c0_i32 : i32, i32
  }
}

</mosaic_0001>

<llo_original>
// kernel: _forward_impl.1
$region0: #{_forward_impl.1}
  #allocation0 [shape = 'u32[]', space=smem, size = 0x4, offset = 0x4, fixed_abs, tag = 'smem constant byte address 0x4 - core index']
  #allocation1 [shape = 'u32[144,128]{1,0:T(1,128)}', space=vmem, size = 0x12000, scoped, tag = 'internal scratch']
  %s0 = inlined_call_operand.vmem [shape: f32[16,90], index: 0, kind: input, shape index: {}]
  %s1 = inlined_call_operand.hbm [shape: bf16[90,128], index: 1, kind: input, shape index: {}]
  %s2 = inlined_call_operand.hbm [shape: bf16[128,640], index: 2, kind: input, shape index: {}]
  %s3 = inlined_call_operand.vmem [shape: bf16[1,768], index: 3, kind: input, shape index: {}]
  %s4 = inlined_call_operand.vmem [shape: bf16[16,128], index: 4, kind: output, shape index: {}]
  %s5 = sld [smem:[#allocation0]]
  $region34: #{_forward_impl.1} parent=0
    _
  %s7 = ssub.s32 1, %s5
  %s8 = scalar_select 0, %s7, %s5
  $region1: #{_forward_impl.1} parent=0
    #allocation2 [shape = 'u8[24576]{0}', space=vmem, size = 0x6000, scoped, tag = 'input window, operand 1, single buffered']
    #allocation3 [shape = 's32[1]{0}', space=sflag, size = 0x4, scoped, tag = 'scoped memory for _forward_impl.1']
    #allocation4 [shape = 'u8[163840]{0}', space=vmem, size = 0x28000, scoped, tag = 'input window, operand 2, single buffered']
    #allocation5 [shape = 's32[1]{0}', space=sflag, size = 0x4, scoped, tag = 'scoped memory for _forward_impl.1']
    %9 = vsyncpa [#allocation3], 0
    %10 = vsyncpa [#allocation5], 0
    // Predicated region
    $region2: #{_forward_impl.1} parent=1 // pred_check
      _
    $region3: #{_forward_impl.1} parent=1 // pred_check_branch
      %12 = sbr.rel (0) target = $region5
    $region4: #{_forward_impl.1} parent=1 // pred_region
      _
    $region5: #{_forward_impl.1} parent=1 // pred_fallthru
      _
    // Predicated region
    $region6: #{_forward_impl.1} parent=1 // pred_check
      _
    $region7: #{_forward_impl.1} parent=1 // pred_check_branch
      %14 = sbr.rel (0) target = $region9
    $region8: #{_forward_impl.1} parent=1 // pred_region
      %s16 = ssub.s32 768, 768
      %17 = vsyncadd [#allocation3], %s16
      %s18 = sshll.u32 [#allocation2], 4
      %s19 = int_to_ptr.vmem [resolvable:$true] %s18
      %24 = dma.hbm_to_vmem [thread:$0]  %s1, 768, %s19, [#allocation3], 64, 64, 4
    $region9: #{_forward_impl.1} parent=1 // pred_fallthru
      _
    // Predicated region
    $region10: #{_forward_impl.1} parent=1 // pred_check
      _
    $region11: #{_forward_impl.1} parent=1 // pred_check_branch
      %26 = sbr.rel (0) target = $region13
    $region12: #{_forward_impl.1} parent=1 // pred_region
      %s28 = ssub.s32 5120, 5120
      %29 = vsyncadd [#allocation5], %s28
      %s30 = sshll.u32 [#allocation4], 4
      %s31 = int_to_ptr.vmem [resolvable:$true] %s30
      %36 = dma.hbm_to_vmem [thread:$0]  %s2, 5120, %s31, [#allocation5], 320, 320, 20
    $region13: #{_forward_impl.1} parent=1 // pred_fallthru
      _
    // Predicated region
    $region14: #{_forward_impl.1} parent=1 // pred_check
      _
    $region15: #{_forward_impl.1} parent=1 // pred_check_branch
      %38 = sbr.rel (0) target = $region17
    $region16: #{_forward_impl.1} parent=1 // pred_region
      _
    $region17: #{_forward_impl.1} parent=1 // pred_fallthru
      _
    // Predicated region
    $region18: #{_forward_impl.1} parent=1 // pred_check
      _
    $region19: #{_forward_impl.1} parent=1 // pred_check_branch
      %40 = sbr.rel (0) target = $region21
    $region20: #{_forward_impl.1} parent=1 // pred_region
      %41 = dma.done [#allocation3], 768
    $region21: #{_forward_impl.1} parent=1 // pred_fallthru
      _
    // Predicated region
    $region22: #{_forward_impl.1} parent=1 // pred_check
      _
    $region23: #{_forward_impl.1} parent=1 // pred_check_branch
      %43 = sbr.rel (0) target = $region25
    $region24: #{_forward_impl.1} parent=1 // pred_region
      %44 = dma.done [#allocation5], 5120
    $region25: #{_forward_impl.1} parent=1 // pred_fallthru
      _
    %v46 = vld [vmem:[%s0] sm:$0xff]
    %v47 = vld [vmem:[%s0 + $0x8] sm:$0xff]
    %v48 = vpack.c.bf16 %v47, %v46
    %v49 = vld [vmem:[#allocation2] sm:$0xf]
    %v50 = vld [vmem:[#allocation2 + $0x4] sm:$0xf]
    %v51 = vld [vmem:[#allocation2 + $0x8] sm:$0xf]
    %v52 = vld [vmem:[#allocation2 + $0xc] sm:$0xf]
    %v53 = vld [vmem:[#allocation2 + $0x10] sm:$0xf]
    %v54 = vld [vmem:[#allocation2 + $0x14] sm:$0xf]
    %v55 = vld [vmem:[#allocation2 + $0x18] sm:$0xf]
    %v56 = vld [vmem:[#allocation2 + $0x1c] sm:$0xf]
    %v57 = vld [vmem:[#allocation2 + $0x20] sm:$0xf]
    %v58 = vld [vmem:[#allocation2 + $0x24] sm:$0xf]
    %v59 = vld [vmem:[#allocation2 + $0x28] sm:$0xf]
    %v60 = vld [vmem:[#allocation2 + $0x2c] sm:$0x1]
    %v61 = vld [vmem:[%s3] sm:$0x1]
    %v74 = vunpack.c.l.b16 %v49
    %v75 = vunpack.c.l.b16 %v50
    %v76 = vunpack.c.l.b16 %v51
    %v77 = vunpack.c.l.b16 %v52
    %v78 = vunpack.c.l.b16 %v53
    %v79 = vunpack.c.l.b16 %v54
    %v80 = vunpack.c.l.b16 %v55
    %v81 = vunpack.c.l.b16 %v56
    %v82 = vunpack.c.l.b16 %v57
    %v83 = vunpack.c.l.b16 %v58
    %v84 = vunpack.c.l.b16 %v59
    %v85 = vunpack.c.l.b16 %v60
    %v86 = vpack.c.b16 %v75, %v74
    %v87 = vpack.c.b16 %v77, %v76
    %v88 = vpack.c.b16 %v79, %v78
    %v89 = vpack.c.b16 %v81, %v80
    %v90 = vpack.c.b16 %v83, %v82
    %v91 = vpack.c.b16 %v85, %v84
    %vm97 = vcmask 736256
    %v99 = vsel %vm97, %v48, 0
    %vm101 = vcmask 1044480
    %v103 = vsel %vm101, %v91, 0
    %105 = vmatprep.subr.bf16.mxu0 0
    %106 = vmatpush1.bf16.msra.mxu0 0
    %107 = vmatprep.subr.bf16.mxu0 0
    %108 = vmatpush1.bf16.msra.mxu0 0
    %109 = vmatprep.subr.bf16.mxu0 0
    %110 = vmatpush1.bf16.msra.mxu0 %v103
    %111 = vmatprep.subr.bf16.mxu0 0
    %112 = vmatpush1.bf16.msra.mxu0 %v90
    %113 = vmatprep.subr.bf16.mxu0 0
    %114 = vmatpush1.bf16.msra.mxu0 %v89
    %115 = vmatprep.subr.bf16.mxu0 0
    %116 = vmatpush1.bf16.msra.mxu0 %v88
    %117 = vmatprep.subr.bf16.mxu0 0
    %118 = vmatpush1.bf16.msra.mxu0 %v87
    %119 = vmatprep.subr.bf16.mxu0 0
    %120 = vmatpush1.bf16.msra.mxu0 %v86
    %121 = vmatprep.subr.bf16.mxu0 0
    %122 = vmatpush2.bf16.msra.mxu0 0
    %123 = vmatprep.subr.bf16.mxu0 0
    %124 = vmatpush2.bf16.msra.mxu0 0
    %125 = vmatprep.subr.bf16.mxu0 0
    %126 = vmatpush2.bf16.msra.mxu0 0
    %127 = vmatprep.subr.bf16.mxu0 0
    %128 = vmatpush2.bf16.msra.mxu0 0
    %129 = vmatprep.subr.bf16.mxu0 0
    %130 = vmatpush2.bf16.msra.mxu0 0
    %131 = vmatprep.subr.bf16.mxu0 0
    %132 = vmatpush2.bf16.msra.mxu0 0
    %133 = vmatprep.subr.bf16.mxu0 0
    %134 = vmatpush2.bf16.msra.mxu0 0
    %135 = vmatprep.subr.bf16.mxu0 0
    %136 = vmatpush2.bf16.msra.mxu0 0
    %137 = vmatprep.mubr.bf16.mxu0 0
    %138 = vmatmul.mubr.bf16.gmra.mxu0 %v99
    %v139 = vpop.f32.mrf.mxu0
    %v140 = vadd.f32 0.0, %v139
    %v141 = vpop.f32.mrf.mxu0
    %v142 = vpop.f32.mrf.mxu0
    %v143 = vadd.f32 0.0, %v142
    %v144 = vpop.f32.mrf.mxu0
    %145 = vdwg.mxu0
    %v146 = vpack.c.bf16 %v143, %v140
    %v148 = vpack.i.b16 %v61, %v61
    %v150 = vlaneseq
    %v151 = vshrl.u32 %v150, 7
    %v152 = vsub.s32 0, %v151
    %v153 = vrot.slane %v148, %v152
    %v154 = vadd.bf16 %v146, %v153
    %v155 = vmax.bf16 %v154, 0
    %v156 = vld [vmem:[#allocation4] sm:$0xf]
    %v157 = vld [vmem:[#allocation4 + $0x14] sm:$0xf]
    %v158 = vld [vmem:[#allocation4 + $0x28] sm:$0xf]
    %v159 = vld [vmem:[#allocation4 + $0x3c] sm:$0xf]
    %v160 = vld [vmem:[#allocation4 + $0x50] sm:$0xf]
    %v161 = vld [vmem:[#allocation4 + $0x64] sm:$0xf]
    %v162 = vld [vmem:[#allocation4 + $0x78] sm:$0xf]
    %v163 = vld [vmem:[#allocation4 + $0x8c] sm:$0xf]
    %v164 = vld [vmem:[#allocation4 + $0xa0] sm:$0xf]
    %v165 = vld [vmem:[#allocation4 + $0xb4] sm:$0xf]
    %v166 = vld [vmem:[#allocation4 + $0xc8] sm:$0xf]
    %v167 = vld [vmem:[#allocation4 + $0xdc] sm:$0xf]
    %v168 = vld [vmem:[#allocation4 + $0xf0] sm:$0xf]
    %v169 = vld [vmem:[#allocation4 + $0x104] sm:$0xf]
    %v170 = vld [vmem:[#allocation4 + $0x118] sm:$0xf]
    %v171 = vld [vmem:[#allocation4 + $0x12c] sm:$0xf]
    %v172 = vld [vmem:[%s3 + $0x1] sm:$0x1]
    %v189 = vunpack.c.l.b16 %v156
    %v190 = vunpack.c.l.b16 %v157
    %v191 = vunpack.c.l.b16 %v158
    %v192 = vunpack.c.l.b16 %v159
    %v193 = vunpack.c.l.b16 %v160
    %v194 = vunpack.c.l.b16 %v161
    %v195 = vunpack.c.l.b16 %v162
    %v196 = vunpack.c.l.b16 %v163
    %v197 = vunpack.c.l.b16 %v164
    %v198 = vunpack.c.l.b16 %v165
    %v199 = vunpack.c.l.b16 %v166
    %v200 = vunpack.c.l.b16 %v167
    %v201 = vunpack.c.l.b16 %v168
    %v202 = vunpack.c.l.b16 %v169
    %v203 = vunpack.c.l.b16 %v170
    %v204 = vunpack.c.l.b16 %v171
    %v205 = vpack.c.b16 %v190, %v189
    %v206 = vpack.c.b16 %v192, %v191
    %v207 = vpack.c.b16 %v194, %v193
    %v208 = vpack.c.b16 %v196, %v195
    %v209 = vpack.c.b16 %v198, %v197
    %v210 = vpack.c.b16 %v200, %v199
    %v211 = vpack.c.b16 %v202, %v201
    %v212 = vpack.c.b16 %v204, %v203
    %221 = vmatprep.subr.bf16.mxu0 0
    %222 = vmatpush1.bf16.msra.mxu0 %v212
    %223 = vmatprep.subr.bf16.mxu0 0
    %224 = vmatpush1.bf16.msra.mxu0 %v211
    %225 = vmatprep.subr.bf16.mxu0 0
    %226 = vmatpush1.bf16.msra.mxu0 %v210
    %227 = vmatprep.subr.bf16.mxu0 0
    %228 = vmatpush1.bf16.msra.mxu0 %v209
    %229 = vmatprep.subr.bf16.mxu0 0
    %230 = vmatpush1.bf16.msra.mxu0 %v208
    %231 = vmatprep.subr.bf16.mxu0 0
    %232 = vmatpush1.bf16.msra.mxu0 %v207
    %233 = vmatprep.subr.bf16.mxu0 0
    %234 = vmatpush1.bf16.msra.mxu0 %v206
    %235 = vmatprep.subr.bf16.mxu0 0
    %236 = vmatpush1.bf16.msra.mxu0 %v205
    %237 = vmatprep.subr.bf16.mxu0 0
    %238 = vmatpush2.bf16.msra.mxu0 0
    %239 = vmatprep.subr.bf16.mxu0 0
    %240 = vmatpush2.bf16.msra.mxu0 0
    %241 = vmatprep.subr.bf16.mxu0 0
    %242 = vmatpush2.bf16.msra.mxu0 0
    %243 = vmatprep.subr.bf16.mxu0 0
    %244 = vmatpush2.bf16.msra.mxu0 0
    %245 = vmatprep.subr.bf16.mxu0 0
    %246 = vmatpush2.bf16.msra.mxu0 0
    %247 = vmatprep.subr.bf16.mxu0 0
    %248 = vmatpush2.bf16.msra.mxu0 0
    %249 = vmatprep.subr.bf16.mxu0 0
    %250 = vmatpush2.bf16.msra.mxu0 0
    %251 = vmatprep.subr.bf16.mxu0 0
    %252 = vmatpush2.bf16.msra.mxu0 0
    %253 = vmatprep.mubr.bf16.mxu0 0
    %254 = vmatmul.mubr.bf16.gmra.mxu0 %v155
    %v255 = vpop.f32.mrf.mxu0
    %v256 = vadd.f32 0.0, %v255
    %v257 = vpop.f32.mrf.mxu0
    %v258 = vpop.f32.mrf.mxu0
    %v259 = vadd.f32 0.0, %v258
    %v260 = vpop.f32.mrf.mxu0
    %261 = vdwg.mxu0
    %v262 = vpack.c.bf16 %v259, %v256
    %v264 = vpack.i.b16 %v172, %v172
    %v266 = vlaneseq
    %v267 = vshrl.u32 %v266, 7
    %v268 = vsub.s32 0, %v267
    %v269 = vrot.slane %v264, %v268
    %v270 = vadd.bf16 %v262, %v269
    %v271 = vmax.bf16 %v270, 0
    %v272 = vld [vmem:[#allocation4 + $0x4] sm:$0xf]
    %v273 = vld [vmem:[#allocation4 + $0x18] sm:$0xf]
    %v274 = vld [vmem:[#allocation4 + $0x2c] sm:$0xf]
    %v275 = vld [vmem:[#allocation4 + $0x40] sm:$0xf]
    %v276 = vld [vmem:[#allocation4 + $0x54] sm:$0xf]
    %v277 = vld [vmem:[#allocation4 + $0x68] sm:$0xf]
    %v278 = vld [vmem:[#allocation4 + $0x7c] sm:$0xf]
    %v279 = vld [vmem:[#allocation4 + $0x90] sm:$0xf]
    %v280 = vld [vmem:[#allocation4 + $0xa4] sm:$0xf]
    %v281 = vld [vmem:[#allocation4 + $0xb8] sm:$0xf]
    %v282 = vld [vmem:[#allocation4 + $0xcc] sm:$0xf]
    %v283 = vld [vmem:[#allocation4 + $0xe0] sm:$0xf]
    %v284 = vld [vmem:[#allocation4 + $0xf4] sm:$0xf]
    %v285 = vld [vmem:[#allocation4 + $0x108] sm:$0xf]
    %v286 = vld [vmem:[#allocation4 + $0x11c] sm:$0xf]
    %v287 = vld [vmem:[#allocation4 + $0x130] sm:$0xf]
    %v288 = vld [vmem:[%s3 + $0x2] sm:$0x1]
    %v305 = vunpack.c.l.b16 %v272
    %v306 = vunpack.c.l.b16 %v273
    %v307 = vunpack.c.l.b16 %v274
    %v308 = vunpack.c.l.b16 %v275
    %v309 = vunpack.c.l.b16 %v276
    %v310 = vunpack.c.l.b16 %v277
    %v311 = vunpack.c.l.b16 %v278
    %v312 = vunpack.c.l.b16 %v279
    %v313 = vunpack.c.l.b16 %v280
    %v314 = vunpack.c.l.b16 %v281
    %v315 = vunpack.c.l.b16 %v282
    %v316 = vunpack.c.l.b16 %v283
    %v317 = vunpack.c.l.b16 %v284
    %v318 = vunpack.c.l.b16 %v285
    %v319 = vunpack.c.l.b16 %v286
    %v320 = vunpack.c.l.b16 %v287
    %v321 = vpack.c.b16 %v306, %v305
    %v322 = vpack.c.b16 %v308, %v307
    %v323 = vpack.c.b16 %v310, %v309
    %v324 = vpack.c.b16 %v312, %v311
    %v325 = vpack.c.b16 %v314, %v313
    %v326 = vpack.c.b16 %v316, %v315
    %v327 = vpack.c.b16 %v318, %v317
    %v328 = vpack.c.b16 %v320, %v319
    %337 = vmatprep.subr.bf16.mxu0 0
    %338 = vmatpush1.bf16.msra.mxu0 %v328
    %339 = vmatprep.subr.bf16.mxu0 0
    %340 = vmatpush1.bf16.msra.mxu0 %v327
    %341 = vmatprep.subr.bf16.mxu0 0
    %342 = vmatpush1.bf16.msra.mxu0 %v326
    %343 = vmatprep.subr.bf16.mxu0 0
    %344 = vmatpush1.bf16.msra.mxu0 %v325
    %345 = vmatprep.subr.bf16.mxu0 0
    %346 = vmatpush1.bf16.msra.mxu0 %v324
    %347 = vmatprep.subr.bf16.mxu0 0
    %348 = vmatpush1.bf16.msra.mxu0 %v323
    %349 = vmatprep.subr.bf16.mxu0 0
    %350 = vmatpush1.bf16.msra.mxu0 %v322
    %351 = vmatprep.subr.bf16.mxu0 0
    %352 = vmatpush1.bf16.msra.mxu0 %v321
    %353 = vmatprep.subr.bf16.mxu0 0
    %354 = vmatpush2.bf16.msra.mxu0 0
    %355 = vmatprep.subr.bf16.mxu0 0
    %356 = vmatpush2.bf16.msra.mxu0 0
    %357 = vmatprep.subr.bf16.mxu0 0
    %358 = vmatpush2.bf16.msra.mxu0 0
    %359 = vmatprep.subr.bf16.mxu0 0
    %360 = vmatpush2.bf16.msra.mxu0 0
    %361 = vmatprep.subr.bf16.mxu0 0
    %362 = vmatpush2.bf16.msra.mxu0 0
    %363 = vmatprep.subr.bf16.mxu0 0
    %364 = vmatpush2.bf16.msra.mxu0 0
    %365 = vmatprep.subr.bf16.mxu0 0
    %366 = vmatpush2.bf16.msra.mxu0 0
    %367 = vmatprep.subr.bf16.mxu0 0
    %368 = vmatpush2.bf16.msra.mxu0 0
    %369 = vmatprep.mubr.bf16.mxu0 0
    %370 = vmatmul.mubr.bf16.gmra.mxu0 %v271
    %v371 = vpop.f32.mrf.mxu0
    %v372 = vadd.f32 0.0, %v371
    %v373 = vpop.f32.mrf.mxu0
    %v374 = vpop.f32.mrf.mxu0
    %v375 = vadd.f32 0.0, %v374
    %v376 = vpop.f32.mrf.mxu0
    %377 = vdwg.mxu0
    %v378 = vpack.c.bf16 %v375, %v372
    %v380 = vpack.i.b16 %v288, %v288
    %v382 = vlaneseq
    %v383 = vshrl.u32 %v382, 7
    %v384 = vsub.s32 0, %v383
    %v385 = vrot.slane %v380, %v384
    %v386 = vadd.bf16 %v378, %v385
    %v387 = vld [vmem:[#allocation4 + $0x8] sm:$0xf]
    %v388 = vld [vmem:[#allocation4 + $0x1c] sm:$0xf]
    %v389 = vld [vmem:[#allocation4 + $0x30] sm:$0xf]
    %v390 = vld [vmem:[#allocation4 + $0x44] sm:$0xf]
    %v391 = vld [vmem:[#allocation4 + $0x58] sm:$0xf]
    %v392 = vld [vmem:[#allocation4 + $0x6c] sm:$0xf]
    %v393 = vld [vmem:[#allocation4 + $0x80] sm:$0xf]
    %v394 = vld [vmem:[#allocation4 + $0x94] sm:$0xf]
    %v395 = vld [vmem:[#allocation4 + $0xa8] sm:$0xf]
    %v396 = vld [vmem:[#allocation4 + $0xbc] sm:$0xf]
    %v397 = vld [vmem:[#allocation4 + $0xd0] sm:$0xf]
    %v398 = vld [vmem:[#allocation4 + $0xe4] sm:$0xf]
    %v399 = vld [vmem:[#allocation4 + $0xf8] sm:$0xf]
    %v400 = vld [vmem:[#allocation4 + $0x10c] sm:$0xf]
    %v401 = vld [vmem:[#allocation4 + $0x120] sm:$0xf]
    %v402 = vld [vmem:[#allocation4 + $0x134] sm:$0xf]
    %v403 = vld [vmem:[%s3 + $0x3] sm:$0x1]
    %v420 = vunpack.c.l.b16 %v387
    %v421 = vunpack.c.l.b16 %v388
    %v422 = vunpack.c.l.b16 %v389
    %v423 = vunpack.c.l.b16 %v390
    %v424 = vunpack.c.l.b16 %v391
    %v425 = vunpack.c.l.b16 %v392
    %v426 = vunpack.c.l.b16 %v393
    %v427 = vunpack.c.l.b16 %v394
    %v428 = vunpack.c.l.b16 %v395
    %v429 = vunpack.c.l.b16 %v396
    %v430 = vunpack.c.l.b16 %v397
    %v431 = vunpack.c.l.b16 %v398
    %v432 = vunpack.c.l.b16 %v399
    %v433 = vunpack.c.l.b16 %v400
    %v434 = vunpack.c.l.b16 %v401
    %v435 = vunpack.c.l.b16 %v402
    %v436 = vpack.c.b16 %v421, %v420
    %v437 = vpack.c.b16 %v423, %v422
    %v438 = vpack.c.b16 %v425, %v424
    %v439 = vpack.c.b16 %v427, %v426
    %v440 = vpack.c.b16 %v429, %v428
    %v441 = vpack.c.b16 %v431, %v430
    %v442 = vpack.c.b16 %v433, %v432
    %v443 = vpack.c.b16 %v435, %v434
    %452 = vmatprep.subr.bf16.mxu0 0
    %453 = vmatpush1.bf16.msra.mxu0 %v443
    %454 = vmatprep.subr.bf16.mxu0 0
    %455 = vmatpush1.bf16.msra.mxu0 %v442
    %456 = vmatprep.subr.bf16.mxu0 0
    %457 = vmatpush1.bf16.msra.mxu0 %v441
    %458 = vmatprep.subr.bf16.mxu0 0
    %459 = vmatpush1.bf16.msra.mxu0 %v440
    %460 = vmatprep.subr.bf16.mxu0 0
    %461 = vmatpush1.bf16.msra.mxu0 %v439
    %462 = vmatprep.subr.bf16.mxu0 0
    %463 = vmatpush1.bf16.msra.mxu0 %v438
    %464 = vmatprep.subr.bf16.mxu0 0
    %465 = vmatpush1.bf16.msra.mxu0 %v437
    %466 = vmatprep.subr.bf16.mxu0 0
    %467 = vmatpush1.bf16.msra.mxu0 %v436
    %468 = vmatprep.subr.bf16.mxu0 0
    %469 = vmatpush2.bf16.msra.mxu0 0
    %470 = vmatprep.subr.bf16.mxu0 0
    %471 = vmatpush2.bf16.msra.mxu0 0
    %472 = vmatprep.subr.bf16.mxu0 0
    %473 = vmatpush2.bf16.msra.mxu0 0
    %474 = vmatprep.subr.bf16.mxu0 0
    %475 = vmatpush2.bf16.msra.mxu0 0
    %476 = vmatprep.subr.bf16.mxu0 0
    %477 = vmatpush2.bf16.msra.mxu0 0
    %478 = vmatprep.subr.bf16.mxu0 0
    %479 = vmatpush2.bf16.msra.mxu0 0
    %480 = vmatprep.subr.bf16.mxu0 0
    %481 = vmatpush2.bf16.msra.mxu0 0
    %482 = vmatprep.subr.bf16.mxu0 0
    %483 = vmatpush2.bf16.msra.mxu0 0
    %484 = vmatprep.mubr.bf16.mxu0 0
    %485 = vmatmul.mubr.bf16.gmra.mxu0 %v386
    %v486 = vpop.f32.mrf.mxu0
    %v487 = vadd.f32 0.0, %v486
    %v488 = vpop.f32.mrf.mxu0
    %v489 = vpop.f32.mrf.mxu0
    %v490 = vadd.f32 0.0, %v489
    %v491 = vpop.f32.mrf.mxu0
    %492 = vdwg.mxu0
    %v493 = vpack.c.bf16 %v490, %v487
    %v495 = vpack.i.b16 %v403, %v403
    %v497 = vlaneseq
    %v498 = vshrl.u32 %v497, 7
    %v499 = vsub.s32 0, %v498
    %v500 = vrot.slane %v495, %v499
    %v501 = vadd.bf16 %v493, %v500
    %v502 = vmax.bf16 %v501, 0
    %v503 = vld [vmem:[#allocation4 + $0xc] sm:$0xf]
    %v504 = vld [vmem:[#allocation4 + $0x20] sm:$0xf]
    %v505 = vld [vmem:[#allocation4 + $0x34] sm:$0xf]
    %v506 = vld [vmem:[#allocation4 + $0x48] sm:$0xf]
    %v507 = vld [vmem:[#allocation4 + $0x5c] sm:$0xf]
    %v508 = vld [vmem:[#allocation4 + $0x70] sm:$0xf]
    %v509 = vld [vmem:[#allocation4 + $0x84] sm:$0xf]
    %v510 = vld [vmem:[#allocation4 + $0x98] sm:$0xf]
    %v511 = vld [vmem:[#allocation4 + $0xac] sm:$0xf]
    %v512 = vld [vmem:[#allocation4 + $0xc0] sm:$0xf]
    %v513 = vld [vmem:[#allocation4 + $0xd4] sm:$0xf]
    %v514 = vld [vmem:[#allocation4 + $0xe8] sm:$0xf]
    %v515 = vld [vmem:[#allocation4 + $0xfc] sm:$0xf]
    %v516 = vld [vmem:[#allocation4 + $0x110] sm:$0xf]
    %v517 = vld [vmem:[#allocation4 + $0x124] sm:$0xf]
    %v518 = vld [vmem:[#allocation4 + $0x138] sm:$0xf]
    %v519 = vld [vmem:[%s3 + $0x4] sm:$0x1]
    %v536 = vunpack.c.l.b16 %v503
    %v537 = vunpack.c.l.b16 %v504
    %v538 = vunpack.c.l.b16 %v505
    %v539 = vunpack.c.l.b16 %v506
    %v540 = vunpack.c.l.b16 %v507
    %v541 = vunpack.c.l.b16 %v508
    %v542 = vunpack.c.l.b16 %v509
    %v543 = vunpack.c.l.b16 %v510
    %v544 = vunpack.c.l.b16 %v511
    %v545 = vunpack.c.l.b16 %v512
    %v546 = vunpack.c.l.b16 %v513
    %v547 = vunpack.c.l.b16 %v514
    %v548 = vunpack.c.l.b16 %v515
    %v549 = vunpack.c.l.b16 %v516
    %v550 = vunpack.c.l.b16 %v517
    %v551 = vunpack.c.l.b16 %v518
    %v552 = vpack.c.b16 %v537, %v536
    %v553 = vpack.c.b16 %v539, %v538
    %v554 = vpack.c.b16 %v541, %v540
    %v555 = vpack.c.b16 %v543, %v542
    %v556 = vpack.c.b16 %v545, %v544
    %v557 = vpack.c.b16 %v547, %v546
    %v558 = vpack.c.b16 %v549, %v548
    %v559 = vpack.c.b16 %v551, %v550
    %568 = vmatprep.subr.bf16.mxu0 0
    %569 = vmatpush1.bf16.msra.mxu0 %v559
    %570 = vmatprep.subr.bf16.mxu0 0
    %571 = vmatpush1.bf16.msra.mxu0 %v558
    %572 = vmatprep.subr.bf16.mxu0 0
    %573 = vmatpush1.bf16.msra.mxu0 %v557
    %574 = vmatprep.subr.bf16.mxu0 0
    %575 = vmatpush1.bf16.msra.mxu0 %v556
    %576 = vmatprep.subr.bf16.mxu0 0
    %577 = vmatpush1.bf16.msra.mxu0 %v555
    %578 = vmatprep.subr.bf16.mxu0 0
    %579 = vmatpush1.bf16.msra.mxu0 %v554
    %580 = vmatprep.subr.bf16.mxu0 0
    %581 = vmatpush1.bf16.msra.mxu0 %v553
    %582 = vmatprep.subr.bf16.mxu0 0
    %583 = vmatpush1.bf16.msra.mxu0 %v552
    %584 = vmatprep.subr.bf16.mxu0 0
    %585 = vmatpush2.bf16.msra.mxu0 0
    %586 = vmatprep.subr.bf16.mxu0 0
    %587 = vmatpush2.bf16.msra.mxu0 0
    %588 = vmatprep.subr.bf16.mxu0 0
    %589 = vmatpush2.bf16.msra.mxu0 0
    %590 = vmatprep.subr.bf16.mxu0 0
    %591 = vmatpush2.bf16.msra.mxu0 0
    %592 = vmatprep.subr.bf16.mxu0 0
    %593 = vmatpush2.bf16.msra.mxu0 0
    %594 = vmatprep.subr.bf16.mxu0 0
    %595 = vmatpush2.bf16.msra.mxu0 0
    %596 = vmatprep.subr.bf16.mxu0 0
    %597 = vmatpush2.bf16.msra.mxu0 0
    %598 = vmatprep.subr.bf16.mxu0 0
    %599 = vmatpush2.bf16.msra.mxu0 0
    %600 = vmatprep.mubr.bf16.mxu0 0
    %601 = vmatmul.mubr.bf16.gmra.mxu0 %v502
    %v602 = vpop.f32.mrf.mxu0
    %v603 = vadd.f32 0.0, %v602
    %v604 = vpop.f32.mrf.mxu0
    %v605 = vpop.f32.mrf.mxu0
    %v606 = vadd.f32 0.0, %v605
    %v607 = vpop.f32.mrf.mxu0
    %608 = vdwg.mxu0
    %v609 = vpack.c.bf16 %v606, %v603
    %v611 = vpack.i.b16 %v519, %v519
    %v613 = vlaneseq
    %v614 = vshrl.u32 %v613, 7
    %v615 = vsub.s32 0, %v614
    %v616 = vrot.slane %v611, %v615
    %v617 = vadd.bf16 %v609, %v616
    %v618 = vmax.bf16 %v617, 0
    %v619 = vld [vmem:[#allocation4 + $0x10] sm:$0xf]
    %v620 = vld [vmem:[#allocation4 + $0x24] sm:$0xf]
    %v621 = vld [vmem:[#allocation4 + $0x38] sm:$0xf]
    %v622 = vld [vmem:[#allocation4 + $0x4c] sm:$0xf]
    %v623 = vld [vmem:[#allocation4 + $0x60] sm:$0xf]
    %v624 = vld [vmem:[#allocation4 + $0x74] sm:$0xf]
    %v625 = vld [vmem:[#allocation4 + $0x88] sm:$0xf]
    %v626 = vld [vmem:[#allocation4 + $0x9c] sm:$0xf]
    %v627 = vld [vmem:[#allocation4 + $0xb0] sm:$0xf]
    %v628 = vld [vmem:[#allocation4 + $0xc4] sm:$0xf]
    %v629 = vld [vmem:[#allocation4 + $0xd8] sm:$0xf]
    %v630 = vld [vmem:[#allocation4 + $0xec] sm:$0xf]
    %v631 = vld [vmem:[#allocation4 + $0x100] sm:$0xf]
    %v632 = vld [vmem:[#allocation4 + $0x114] sm:$0xf]
    %v633 = vld [vmem:[#allocation4 + $0x128] sm:$0xf]
    %v634 = vld [vmem:[#allocation4 + $0x13c] sm:$0xf]
    %v635 = vld [vmem:[%s3 + $0x5] sm:$0x1]
    %v652 = vunpack.c.l.b16 %v619
    %v653 = vunpack.c.l.b16 %v620
    %v654 = vunpack.c.l.b16 %v621
    %v655 = vunpack.c.l.b16 %v622
    %v656 = vunpack.c.l.b16 %v623
    %v657 = vunpack.c.l.b16 %v624
    %v658 = vunpack.c.l.b16 %v625
    %v659 = vunpack.c.l.b16 %v626
    %v660 = vunpack.c.l.b16 %v627
    %v661 = vunpack.c.l.b16 %v628
    %v662 = vunpack.c.l.b16 %v629
    %v663 = vunpack.c.l.b16 %v630
    %v664 = vunpack.c.l.b16 %v631
    %v665 = vunpack.c.l.b16 %v632
    %v666 = vunpack.c.l.b16 %v633
    %v667 = vunpack.c.l.b16 %v634
    %v668 = vpack.c.b16 %v653, %v652
    %v669 = vpack.c.b16 %v655, %v654
    %v670 = vpack.c.b16 %v657, %v656
    %v671 = vpack.c.b16 %v659, %v658
    %v672 = vpack.c.b16 %v661, %v660
    %v673 = vpack.c.b16 %v663, %v662
    %v674 = vpack.c.b16 %v665, %v664
    %v675 = vpack.c.b16 %v667, %v666
    %684 = vmatprep.subr.bf16.mxu0 0
    %685 = vmatpush1.bf16.msra.mxu0 %v675
    %686 = vmatprep.subr.bf16.mxu0 0
    %687 = vmatpush1.bf16.msra.mxu0 %v674
    %688 = vmatprep.subr.bf16.mxu0 0
    %689 = vmatpush1.bf16.msra.mxu0 %v673
    %690 = vmatprep.subr.bf16.mxu0 0
    %691 = vmatpush1.bf16.msra.mxu0 %v672
    %692 = vmatprep.subr.bf16.mxu0 0
    %693 = vmatpush1.bf16.msra.mxu0 %v671
    %694 = vmatprep.subr.bf16.mxu0 0
    %695 = vmatpush1.bf16.msra.mxu0 %v670
    %696 = vmatprep.subr.bf16.mxu0 0
    %697 = vmatpush1.bf16.msra.mxu0 %v669
    %698 = vmatprep.subr.bf16.mxu0 0
    %699 = vmatpush1.bf16.msra.mxu0 %v668
    %700 = vmatprep.subr.bf16.mxu0 0
    %701 = vmatpush2.bf16.msra.mxu0 0
    %702 = vmatprep.subr.bf16.mxu0 0
    %703 = vmatpush2.bf16.msra.mxu0 0
    %704 = vmatprep.subr.bf16.mxu0 0
    %705 = vmatpush2.bf16.msra.mxu0 0
    %706 = vmatprep.subr.bf16.mxu0 0
    %707 = vmatpush2.bf16.msra.mxu0 0
    %708 = vmatprep.subr.bf16.mxu0 0
    %709 = vmatpush2.bf16.msra.mxu0 0
    %710 = vmatprep.subr.bf16.mxu0 0
    %711 = vmatpush2.bf16.msra.mxu0 0
    %712 = vmatprep.subr.bf16.mxu0 0
    %713 = vmatpush2.bf16.msra.mxu0 0
    %714 = vmatprep.subr.bf16.mxu0 0
    %715 = vmatpush2.bf16.msra.mxu0 0
    %716 = vmatprep.mubr.bf16.mxu0 0
    %717 = vmatmul.mubr.bf16.gmra.mxu0 %v618
    %v718 = vpop.f32.mrf.mxu0
    %v719 = vadd.f32 0.0, %v718
    %v720 = vpop.f32.mrf.mxu0
    %v721 = vpop.f32.mrf.mxu0
    %v722 = vadd.f32 0.0, %v721
    %v723 = vpop.f32.mrf.mxu0
    %724 = vdwg.mxu0
    %v725 = vpack.c.bf16 %v722, %v719
    %v727 = vpack.i.b16 %v635, %v635
    %v729 = vlaneseq
    %v730 = vshrl.u32 %v729, 7
    %v731 = vsub.s32 0, %v730
    %v732 = vrot.slane %v727, %v731
    %v733 = vadd.bf16 %v725, %v732
    %v734 = vmax.bf16 %v733, 0
    %v736 = vunpack.c.l.b16 %v734
    %v737 = vunpack.c.h.b16 %v734
    %v738 = vpack.c.b16 %v736, %v736
    %v739 = vpack.c.b16 %v737, %v737
    %742 = vst [vmem:[%s4] sm:$0xf] %v738
    %743 = vst [vmem:[%s4 + $0x4] sm:$0xf] %v739
    // Predicated region
    $region26: #{_forward_impl.1} parent=1 // pred_check
      _
    $region27: #{_forward_impl.1} parent=1 // pred_check_branch
      %745 = sbr.rel (0) target = $region29
    $region28: #{_forward_impl.1} parent=1 // pred_region
      _
    $region29: #{_forward_impl.1} parent=1 // pred_fallthru
      _
    // Predicated region
    $region30: #{_forward_impl.1} parent=1 // pred_check
      _
    $region31: #{_forward_impl.1} parent=1 // pred_check_branch
      %747 = sbr.rel (0) target = $region33
    $region32: #{_forward_impl.1} parent=1 // pred_region
      _
    $region33: #{_forward_impl.1} parent=1 // pred_fallthru
      _
    %748 = vsyncpa [#allocation3], 1
    %749 = vsyncpa [#allocation5], 1

</llo_original>
